<compile_context>
chip_gen: v5e
topology: v5e:2x2
jax: 0.10.0
libtpu: 0.0.40
codegen_flags: <defaults>
</compile_context>

<pallas_src>
import functools

import jax
import jax.numpy as jnp
from jax.experimental import pallas as pl
from jax.experimental.pallas import tpu as pltpu


def _round_up(x, m):
    return (x + m - 1) // m * m


def _patch_embed_kernel(x_ref, w_ref, b_ref, o_ref):
    # x_ref: (tm, K_p) bf16 patch rows, w_ref: (K_p, tn) bf16,
    # b_ref: (1, tn) f32, o_ref: (tm, tn) out dtype.
    acc = jnp.dot(x_ref[...], w_ref[...], preferred_element_type=jnp.float32)
    o_ref[...] = (acc + b_ref[...]).astype(o_ref.dtype)


def _vmem_capacity_bytes():
    try:
        return int(pltpu.get_tpu_info().vmem_capacity_bytes)
    except Exception:
        return 64 * 2**20  # conservative fallback = v7x per-TC VMEM


def _select_tiles(M, K_p, D_p, x_bytes, w_bytes, o_bytes, tm_req, vmem_capacity):
    """Jointly pick (tm, tn) against a per-generation VMEM budget.

    Prefer tn = D_p (W resident across the whole inner M sweep, DMA'd exactly
    once, lane-dense output stores).  Only shrink tn (any multiple of 128,
    ragged last D tile via cdiv) if a reasonable token tile cannot also fit.
    Then grow tm up to tm_req within the remaining budget (multiple of 256
    when possible; bf16 packs 16 rows/vreg so never below 16-aligned).
    """
    budget = max(int(0.70 * vmem_capacity), 8 * 2**20)

    def fits_tm(tn):
        # Double-buffered footprint: 2 * (patch tile + W tile + bias + out tile).
        fixed = 2 * (K_p * tn * w_bytes + tn * 4)
        per_row = 2 * (K_p * x_bytes + tn * o_bytes)
        avail = budget - fixed
        return max(avail, 0) // per_row

    tm_floor = min(M, 256)
    tn = D_p
    while tn > 128 and fits_tm(tn) < tm_floor:
        tn = max(128, _round_up(tn // 2, 128))

    tm = min(tm_req, max(fits_tm(tn), 16), M)
    if tm >= M:
        tm = M                     # single full block along M (ragged-free)
    elif tm >= 256:
        tm = (tm // 256) * 256     # match 2x256 MXU feed on v6e/v7x
    else:
        tm = max(16, (tm // 16) * 16)

    # Keep >=2 grid steps when M allows so v7x's 2 TensorCores both get work.
    if pl.cdiv(M, tm) == 1 and pl.cdiv(D_p, tn) == 1 and M > 256:
        tm = max(16, _round_up(pl.cdiv(M, 2), 16))

    return tm, tn


def _patch_embed_matmul(patches, w_kd, bias, *, tm, out_dtype, fuse_patchify):
    """patches: (M, K_p) bf16, w_kd: (K_p, D_p) bf16, bias: (1, D_p) f32."""
    M, K_p = patches.shape
    _, D_p = w_kd.shape

    x_bytes = patches.dtype.itemsize
    w_bytes = w_kd.dtype.itemsize
    o_bytes = jnp.dtype(out_dtype).itemsize

    vmem_capacity = _vmem_capacity_bytes()
    tm_eff, tn = _select_tiles(M, K_p, D_p, x_bytes, w_bytes, o_bytes,
                               tm_req=tm, vmem_capacity=vmem_capacity)

    m_tiles = pl.cdiv(M, tm_eff)
    d_tiles = pl.cdiv(D_p, tn)
    # D outer, M inner: the (K_p, tn) W slab's block index is constant across
    # the inner M sweep, so Pallas skips its re-DMA (W read from HBM once).
    grid = (d_tiles, m_tiles)

    vmem_est = 2 * (tm_eff * K_p * x_bytes
                    + K_p * tn * w_bytes
                    + tn * 4
                    + tm_eff * tn * o_bytes)
    vmem_limit = int(min(max(int(1.5 * vmem_est), 32 * 2**20),
                         int(0.9 * vmem_capacity), 100 * 2**20))
    vmem_limit = max(vmem_limit, vmem_est)

    cost = pl.CostEstimate(
        flops=2 * M * K_p * D_p,
        bytes_accessed=(M * K_p * x_bytes + K_p * D_p * w_bytes
                        + M * D_p * o_bytes),
        transcendentals=0,
    )

    return pl.pallas_call(
        _patch_embed_kernel,
        out_shape=jax.ShapeDtypeStruct((M, D_p), out_dtype),
        grid_spec=pltpu.PrefetchScalarGridSpec(
            num_scalar_prefetch=0,
            grid=grid,
            in_specs=[
                pl.BlockSpec((tm_eff, K_p), lambda j, i: (i, 0)),
                pl.BlockSpec((K_p, tn), lambda j, i: (0, j)),
                pl.BlockSpec((1, tn), lambda j, i: (0, j)),
            ],
            out_specs=pl.BlockSpec((tm_eff, tn), lambda j, i: (i, j)),
        ),
        compiler_params=pltpu.CompilerParams(
            dimension_semantics=("parallel", "parallel"),
            allow_input_fusion=([True, False, False] if fuse_patchify else None),
            vmem_limit_bytes=vmem_limit,
        ),
        cost_estimate=cost,
    )(patches, w_kd, bias)


@functools.partial(jax.jit,
                   static_argnames=("patch_size", "tm", "out_dtype",
                                    "fuse_patchify"))
def patch_embeding_forward(x, conv_weight, conv_bias, patch_size, *, tm=1024,
                           out_dtype=None, fuse_patchify=False):
    """PatchEmbeding.forward.

    x:           (B, C, T, H, W)    PyTorch NCDHW video input
    conv_weight: (D, C, pt, ph, pw) nn.Conv3d weight, stride == kernel_size
    conv_bias:   (D,)
    returns:     (B, N, D) with N = (T//pt)*(H//ph)*(W//pw)

    out_dtype defaults to x.dtype (module semantics).  Pass jnp.bfloat16 when
    the downstream consumer is bf16: the output writeback dominates HBM
    traffic for small K, so this roughly halves kernel bytes.
    """
    B, C, T, H, W = x.shape
    D = conv_weight.shape[0]
    pt, ph, pw = patch_size
    Tp, Hp, Wp = T // pt, H // ph, W // pw
    N = Tp * Hp * Wp
    K = C * pt * ph * pw
    out_dtype = jnp.dtype(x.dtype if out_dtype is None else out_dtype)

    K_p = _round_up(K, 128)
    D_p = _round_up(D, 128)
    compute_dtype = jnp.bfloat16

    # Patchify in bf16: flatten each patch in (c, kt, kh, kw) order to match
    # the flattened conv weight.  (B, Tp, Hp, Wp) row-major token order equals
    # flatten(2).transpose(1, 2) of the conv output.
    xp = x.astype(compute_dtype).reshape(B, C, Tp, pt, Hp, ph, Wp, pw)
    xp = xp.transpose(0, 2, 4, 6, 1, 3, 5, 7)       # (B, Tp, Hp, Wp, C, pt, ph, pw)
    patches = xp.reshape(B * N, K)
    if K_p != K:
        patches = jnp.pad(patches, ((0, 0), (0, K_p - K)))

    w_kd = conv_weight.reshape(D, K).T.astype(compute_dtype)   # (K, D)
    if K_p != K or D_p != D:
        w_kd = jnp.pad(w_kd, ((0, K_p - K), (0, D_p - D)))
    bias = conv_bias.astype(jnp.float32).reshape(1, D)
    if D_p != D:
        bias = jnp.pad(bias, ((0, 0), (0, D_p - D)))

    out = _patch_embed_matmul(patches, w_kd, bias, tm=tm, out_dtype=out_dtype,
                              fuse_patchify=fuse_patchify)
    if D_p != D:
        out = out[:, :D]
    return out.reshape(B, N, D)


if __name__ == "__main__":
    key = jax.random.PRNGKey(0)
    kx, kw, kb = jax.random.split(key, 3)

    # Small shapes consistent with a video patch-embed:
    B, C, T, H, W = 2, 3, 4, 16, 16
    patch_size = (2, 4, 4)
    D = 32
    pt, ph, pw = patch_size
    K = C * pt * ph * pw

    x = jax.random.normal(kx, (B, C, T, H, W), dtype=jnp.float32)
    conv_weight = jax.random.normal(kw, (D, C, pt, ph, pw), dtype=jnp.float32) * 0.02
    conv_bias = jax.random.normal(kb, (D,), dtype=jnp.float32) * 0.02

    out = jax.block_until_ready(
        patch_embeding_forward(x, conv_weight, conv_bias, patch_size=patch_size)
    )

    # Reference (plain JAX): strided conv3d == patchify + matmul, with the
    # same bf16-operand / f32-accumulate math as the kernel.
    Tp, Hp, Wp = T // pt, H // ph, W // pw
    N = Tp * Hp * Wp
    xp = x.reshape(B, C, Tp, pt, Hp, ph, Wp, pw).transpose(0, 2, 4, 6, 1, 3, 5, 7)
    ref = jnp.einsum(
        "bnk,kd->bnd",
        xp.reshape(B, N, K).astype(jnp.bfloat16),
        conv_weight.reshape(D, K).T.astype(jnp.bfloat16),
        preferred_element_type=jnp.float32,
    ) + conv_bias[None, None, :]

    assert out.shape == (B, N, D), out.shape
    assert out.dtype == x.dtype, out.dtype
    max_err = float(jnp.max(jnp.abs(out - ref)))
    assert jnp.allclose(out, ref, atol=2e-2, rtol=2e-2), max_err
    print("KERNEL_OK")
</pallas_src>

<mosaic_0001>
module attributes {stable_mosaic.version = 11 : i64} {
  func.func @_patch_embed_kernel(%arg0: i32, %arg1: i32, %arg2: memref<64x128xbf16, #tpu.memory_space<vmem>>, %arg3: memref<128x128xbf16, #tpu.memory_space<vmem>>, %arg4: memref<1x128xf32, #tpu.memory_space<vmem>>, %arg5: memref<64x128xf32, #tpu.memory_space<vmem>>) attributes {dimension_semantics = [#tpu.dimension_semantics<parallel>, #tpu.dimension_semantics<parallel>], iteration_bounds = array<i64: 1, 1>, scalar_prefetch = 0 : i64, scratch_operands = 0 : i64, tpu.core_type = #tpu.core_type<tc>, window_params = [{transform_indices = @transform_0, window_bounds = array<i64: 64, 128>}, {transform_indices = @transform_1, window_bounds = array<i64: 128, 128>}, {transform_indices = @transform_2, window_bounds = array<i64: 1, 128>}, {transform_indices = @transform_3, window_bounds = array<i64: 64, 128>}]} {
    %c0 = arith.constant 0 : index
    %c0_0 = arith.constant 0 : index
    %0 = vector.load %arg2[%c0, %c0_0] : memref<64x128xbf16, #tpu.memory_space<vmem>>, vector<64x128xbf16>
    %c0_1 = arith.constant 0 : index
    %c0_2 = arith.constant 0 : index
    %1 = vector.load %arg3[%c0_1, %c0_2] : memref<128x128xbf16, #tpu.memory_space<vmem>>, vector<128x128xbf16>
    %cst = arith.constant dense<0.000000e+00> : vector<64x128xf32>
    %2 = tpu.matmul %0, %1, %cst {dimension_numbers = #tpu.dot_dimension_numbers<[1], [0], [0], [1], [0, 0, 1, 1], [], []>} : vector<64x128xbf16>, vector<128x128xbf16>, vector<64x128xf32> -> vector<64x128xf32>
    %c0_3 = arith.constant 0 : index
    %c0_4 = arith.constant 0 : index
    %3 = vector.load %arg4[%c0_3, %c0_4] : memref<1x128xf32, #tpu.memory_space<vmem>>, vector<1x128xf32>
    %4 = vector.broadcast %3 : vector<1x128xf32> to vector<64x128xf32>
    %5 = arith.addf %2, %4 : vector<64x128xf32>
    %c0_5 = arith.constant 0 : index
    %c0_6 = arith.constant 0 : index
    %6 = vector.load %arg5[%c0_5, %c0_6] : memref<64x128xf32, #tpu.memory_space<vmem>>, vector<64x128xf32>
    tpu.vector_store %arg5[%c0_5, %c0_6], %5 {strides = array<i32>} : memref<64x128xf32, #tpu.memory_space<vmem>>, vector<64x128xf32>,
    return
  }
  func.func @transform_0(%arg0: i32, %arg1: i32) -> (i32, i32) {
    %c0_i32 = arith.constant 0 : i32
    %c0_i32_0 = arith.constant 0 : i32
    return %arg1, %c0_i32 : i32, i32
  }
  func.func @transform_1(%arg0: i32, %arg1: i32) -> (i32, i32) {
    %c0_i32 = arith.constant 0 : i32
    %c0_i32_0 = arith.constant 0 : i32
    return %c0_i32, %arg0 : i32, i32
  }
  func.func @transform_2(%arg0: i32, %arg1: i32) -> (i32, i32) {
    %c0_i32 = arith.constant 0 : i32
    %c0_i32_0 = arith.constant 0 : i32
    return %c0_i32, %arg0 : i32, i32
  }
  func.func @transform_3(%arg0: i32, %arg1: i32) -> (i32, i32) {
    %c0_i32 = arith.constant 0 : i32
    return %arg1, %arg0 : i32, i32
  }
}

</mosaic_0001>

<llo_original>
// kernel: patch_embeding_forward.1
$region0: #{patch_embeding_forward.1}
  #allocation0 [shape = 'u32[]', space=smem, size = 0x4, offset = 0x4, fixed_abs, tag = 'smem constant byte address 0x4 - core index']
  #allocation1 [shape = 'u32[72,128]{1,0:T(1,128)}', space=vmem, size = 0x9000, scoped, tag = 'internal scratch']
  %s0 = inlined_call_operand.vmem [shape: bf16[64,128], index: 0, kind: input, shape index: {}]
  %s1 = inlined_call_operand.vmem [shape: bf16[128,128], index: 1, kind: input, shape index: {}]
  %s2 = inlined_call_operand.vmem [shape: f32[1,128], index: 2, kind: input, shape index: {}]
  %s3 = inlined_call_operand.hbm [shape: f32[64,128], index: 3, kind: output, shape index: {}]
  %s4 = sld [smem:[#allocation0]]
  $region22: #{patch_embeding_forward.1} parent=0
    _
  %s6 = ssub.s32 1, %s4
  %s7 = scalar_select 0, %s6, %s4
  $region1: #{patch_embeding_forward.1} parent=0
    #allocation2 [shape = 'u8[32768]{0}', space=vmem, size = 0x8000, scoped, tag = 'output window, operand 0, single buffered']
    #allocation3 [shape = 's32[1]{0}', space=sflag, size = 0x4, scoped, tag = 'scoped memory for patch_embeding_forward.1']
    %8 = vsyncpa [#allocation3], 0
    // Predicated region
    $region2: #{patch_embeding_forward.1} parent=1 // pred_check
      _
    $region3: #{patch_embeding_forward.1} parent=1 // pred_check_branch
      %10 = sbr.rel (0) target = $region5
    $region4: #{patch_embeding_forward.1} parent=1 // pred_region
      _
    $region5: #{patch_embeding_forward.1} parent=1 // pred_fallthru
      _
    // Predicated region
    $region6: #{patch_embeding_forward.1} parent=1 // pred_check
      _
    $region7: #{patch_embeding_forward.1} parent=1 // pred_check_branch
      %12 = sbr.rel (0) target = $region9
    $region8: #{patch_embeding_forward.1} parent=1 // pred_region
      _
    $region9: #{patch_embeding_forward.1} parent=1 // pred_fallthru
      _
    // Predicated region
    $region10: #{patch_embeding_forward.1} parent=1 // pred_check
      _
    $region11: #{patch_embeding_forward.1} parent=1 // pred_check_branch
      %14 = sbr.rel (0) target = $region13
    $region12: #{patch_embeding_forward.1} parent=1 // pred_region
      _
    $region13: #{patch_embeding_forward.1} parent=1 // pred_fallthru
      _
    %v15 = vld [vmem:[%s0] sm:$0xf]
    %v16 = vld [vmem:[%s0 + $0x4] sm:$0xf]
    %v17 = vld [vmem:[%s0 + $0x8] sm:$0xf]
    %v18 = vld [vmem:[%s0 + $0xc] sm:$0xf]
    %v19 = vld [vmem:[%s0 + $0x10] sm:$0xf]
    %v20 = vld [vmem:[%s0 + $0x14] sm:$0xf]
    %v21 = vld [vmem:[%s0 + $0x18] sm:$0xf]
    %v22 = vld [vmem:[%s0 + $0x1c] sm:$0xf]
    %v23 = vld [vmem:[%s1] sm:$0xf]
    %v24 = vld [vmem:[%s1 + $0x4] sm:$0xf]
    %v25 = vld [vmem:[%s1 + $0x8] sm:$0xf]
    %v26 = vld [vmem:[%s1 + $0xc] sm:$0xf]
    %v27 = vld [vmem:[%s1 + $0x10] sm:$0xf]
    %v28 = vld [vmem:[%s1 + $0x14] sm:$0xf]
    %v29 = vld [vmem:[%s1 + $0x18] sm:$0xf]
    %v30 = vld [vmem:[%s1 + $0x1c] sm:$0xf]
    %v31 = vld [vmem:[%s1 + $0x20] sm:$0xf]
    %v32 = vld [vmem:[%s1 + $0x24] sm:$0xf]
    %v33 = vld [vmem:[%s1 + $0x28] sm:$0xf]
    %v34 = vld [vmem:[%s1 + $0x2c] sm:$0xf]
    %v35 = vld [vmem:[%s1 + $0x30] sm:$0xf]
    %v36 = vld [vmem:[%s1 + $0x34] sm:$0xf]
    %v37 = vld [vmem:[%s1 + $0x38] sm:$0xf]
    %v38 = vld [vmem:[%s1 + $0x3c] sm:$0xf]
    %v39 = vld [vmem:[%s2] sm:$0x1]
    %v41 = vperm.slane %v39, 0
    %v51 = vunpack.c.l.b16 %v15
    %v52 = vunpack.c.l.b16 %v16
    %v53 = vunpack.c.l.b16 %v17
    %v54 = vunpack.c.l.b16 %v18
    %v55 = vunpack.c.l.b16 %v19
    %v56 = vunpack.c.l.b16 %v20
    %v57 = vunpack.c.l.b16 %v21
    %v58 = vunpack.c.l.b16 %v22
    %v59 = vpack.c.b16 %v52, %v51
    %v60 = vpack.c.b16 %v54, %v53
    %v61 = vpack.c.b16 %v56, %v55
    %v62 = vpack.c.b16 %v58, %v57
    %v83 = vunpack.c.l.b16 %v23
    %v84 = vunpack.c.l.b16 %v24
    %v85 = vunpack.c.l.b16 %v25
    %v86 = vunpack.c.l.b16 %v26
    %v87 = vunpack.c.l.b16 %v27
    %v88 = vunpack.c.l.b16 %v28
    %v89 = vunpack.c.l.b16 %v29
    %v90 = vunpack.c.l.b16 %v30
    %v91 = vunpack.c.l.b16 %v31
    %v92 = vunpack.c.l.b16 %v32
    %v93 = vunpack.c.l.b16 %v33
    %v94 = vunpack.c.l.b16 %v34
    %v95 = vunpack.c.l.b16 %v35
    %v96 = vunpack.c.l.b16 %v36
    %v97 = vunpack.c.l.b16 %v37
    %v98 = vunpack.c.l.b16 %v38
    %v99 = vpack.c.b16 %v84, %v83
    %v100 = vpack.c.b16 %v86, %v85
    %v101 = vpack.c.b16 %v88, %v87
    %v102 = vpack.c.b16 %v90, %v89
    %v103 = vpack.c.b16 %v92, %v91
    %v104 = vpack.c.b16 %v94, %v93
    %v105 = vpack.c.b16 %v96, %v95
    %v106 = vpack.c.b16 %v98, %v97
    %115 = vmatpush.bf16.msra.mxu0 %v106
    %116 = vmatpush.bf16.msra.mxu0 %v105
    %117 = vmatpush.bf16.msra.mxu0 %v104
    %118 = vmatpush.bf16.msra.mxu0 %v103
    %119 = vmatpush.bf16.msra.mxu0 %v102
    %120 = vmatpush.bf16.msra.mxu0 %v101
    %121 = vmatpush.bf16.msra.mxu0 %v100
    %122 = vmatpush.bf16.msra.mxu0 %v99
    %123 = vmatmul.bf16.gmra.mxu0 %v59
    %v124 = vpop.f32.mrf.mxu0
    %v125 = vadd.f32 %v41, %v124
    %v126 = vpop.f32.mrf.mxu0
    %v127 = vadd.f32 %v41, %v126
    %128 = vmatmul.bf16.gmra.mxu0 %v60
    %v129 = vpop.f32.mrf.mxu0
    %v130 = vadd.f32 %v41, %v129
    %v131 = vpop.f32.mrf.mxu0
    %v132 = vadd.f32 %v41, %v131
    %133 = vmatmul.bf16.gmra.mxu0 %v61
    %v134 = vpop.f32.mrf.mxu0
    %v135 = vadd.f32 %v41, %v134
    %v136 = vpop.f32.mrf.mxu0
    %v137 = vadd.f32 %v41, %v136
    %138 = vmatmul.bf16.gmra.mxu0 %v62
    %v139 = vpop.f32.mrf.mxu0
    %v140 = vadd.f32 %v41, %v139
    %v141 = vpop.f32.mrf.mxu0
    %v142 = vadd.f32 %v41, %v141
    %143 = vdwg.mxu0
    %144 = vst [vmem:[#allocation2] sm:$0xff] %v125
    %145 = vst [vmem:[#allocation2 + $0x8] sm:$0xff] %v127
    %146 = vst [vmem:[#allocation2 + $0x10] sm:$0xff] %v130
    %147 = vst [vmem:[#allocation2 + $0x18] sm:$0xff] %v132
    %148 = vst [vmem:[#allocation2 + $0x20] sm:$0xff] %v135
    %149 = vst [vmem:[#allocation2 + $0x28] sm:$0xff] %v137
    %150 = vst [vmem:[#allocation2 + $0x30] sm:$0xff] %v140
    %151 = vst [vmem:[#allocation2 + $0x38] sm:$0xff] %v142
    // Predicated region
    $region14: #{patch_embeding_forward.1} parent=1 // pred_check
      _
    $region15: #{patch_embeding_forward.1} parent=1 // pred_check_branch
      %153 = sbr.rel (0) target = $region17
    $region16: #{patch_embeding_forward.1} parent=1 // pred_region
      %155 = vsyncadd [#allocation3], 0
      %s156 = sshll.u32 [#allocation2], 4
      %s157 = int_to_ptr.vmem [resolvable:$true] %s156
      %s158 = sshll.u32 %s3, 4
      %s159 = int_to_ptr.hbm [resolvable:$true] %s158
      %164 = dma.vmem_to_hbm [thread:$0]  %s157, 1024, %s159, [#allocation3], 128, 128, 8
    $region17: #{patch_embeding_forward.1} parent=1 // pred_fallthru
      _
    // Predicated region
    $region18: #{patch_embeding_forward.1} parent=1 // pred_check
      _
    $region19: #{patch_embeding_forward.1} parent=1 // pred_check_branch
      %166 = sbr.rel (0) target = $region21
    $region20: #{patch_embeding_forward.1} parent=1 // pred_region
      %168 = dma.done [#allocation3], 1024
    $region21: #{patch_embeding_forward.1} parent=1 // pred_fallthru
      _
    %169 = vsyncpa [#allocation3], 1

</llo_original>
